<compile_context>
chip_gen: v7x
topology: tpu7x:2x2x1
jax: 0.10.0
libtpu: 0.0.40
codegen_flags: <defaults>
</compile_context>

<pallas_src>
import jax
import jax.numpy as jnp
from jax.experimental import pallas as pl
from jax.experimental.pallas import tpu as pltpu

LN_EPS = 1e-5


def _patch_merge_kernel(x_ref, w_ref, b_ref, o_ref):
    # x_ref : (th, 2, W2, 2C)   input row pairs; [:,0]=[x0|x2], [:,1]=[x1|x3]
    # w_ref : (4C, 2C) bf16     gamma-folded, row-permuted reduction weight
    # b_ref : (1, 2C)  f32      beta @ W
    # o_ref : (2C, th*W2)       channel-major (lane-dense) output block
    th, _, w2, c2 = x_ref.shape
    c4 = 2 * c2
    inv_c4 = 1.0 / c4

    xe = x_ref[:, 0].astype(jnp.float32)      # (th, W2, 2C)  even-h half rows
    xo = x_ref[:, 1].astype(jnp.float32)      # (th, W2, 2C)  odd-h half rows

    # LayerNorm statistics over the full 4C features of each token, computed on
    # the 3-D tiles (lane reductions only -> layout-free for any W2).
    # Two-pass variance avoids E[x^2]-E[x]^2 cancellation.
    mean = (jnp.sum(xe, axis=-1, keepdims=True)
            + jnp.sum(xo, axis=-1, keepdims=True)) * inv_c4
    de = xe - mean
    do = xo - mean
    var = (jnp.sum(de * de, axis=-1, keepdims=True)
           + jnp.sum(do * do, axis=-1, keepdims=True)) * inv_c4
    inv = jax.lax.rsqrt(var + LN_EPS)

    # Affine (gamma/beta) is folded into w_ref/b_ref -> just normalize here.
    # Feature order [x0|x2|x1|x3] matches the wrapper's weight-row permutation.
    xn = jnp.concatenate([(de * inv).astype(jnp.bfloat16),
                          (do * inv).astype(jnp.bfloat16)], axis=-1)   # (th, W2, 4C)

    # Single fused K=4C matmul on the MXU with f32 accumulation.  The token
    # flatten happens once, on the bf16 tensor (free when W2 % 8 == 0).
    y = jnp.dot(xn.reshape(th * w2, c4), w_ref[...],
                preferred_element_type=jnp.float32)                    # (tokens, 2C)
    y = y + b_ref[...]

    # Channel-major store: (2C, tokens) is lane-dense; the in-kernel transpose
    # lands on the mostly-idle XLU and removes the XLA output transpose.
    o_ref[...] = y.T.astype(o_ref.dtype)


def _pick_row_tile(h2, w2, max_tokens, *, prefer_split=False):
    """Pick th | h2 such that the (2C, th*w2) output block stays lane-aligned
    (th*w2 % 128 == 0) or covers the full row extent (th == h2), preferring the
    largest tile within the token budget; optionally prefer >=2 grid steps."""
    legal = [d for d in range(1, h2 + 1)
             if h2 % d == 0 and ((d * w2) % 128 == 0 or d == h2)]
    fit = [d for d in legal if d * w2 <= max_tokens]
    if not fit:
        return min(legal)               # smallest legal tile; may exceed budget
    th = max(fit)
    if prefer_split and th == h2 and h2 > 1:
        smaller = [d for d in fit if d < h2]
        if smaller:
            th = max(smaller)           # >=2 row-blocks for v7x's 2 TensorCores
    return th


def patch_merging_forward(x, gamma, beta, weight, *,
                          vmem_block_budget_bytes=12 * 1024 * 1024,
                          max_tokens_per_block=4096):
    """x: (B, C, H, W).  weight: (4C, 2C).  gamma/beta: (4C,).

    Returns (B, 2C, H//2, W//2), matching PyTorch PatchMerging.forward.
    """
    B, C, H, W = x.shape
    assert H % 2 == 0 and W % 2 == 0, (H, W)
    H2, W2 = H // 2, W // 2
    Cin2 = 2 * C          # features per half-row ([x0|x2] or [x1|x3])
    Cin4 = 4 * C          # full LayerNorm feature width
    Cout2 = 2 * C         # reduction output features

    # ---- glue: NCHW -> NHWC (one XLA transpose; see module TODO), then a
    # *free* reshape exposing the 2x2 patch structure.  Half-row hp=0 holds
    # [x0|x2] along the last axis, hp=1 holds [x1|x3].
    xh = jnp.transpose(x, (0, 2, 3, 1))                  # (B, H, W, C)
    xr = xh.reshape(B, H2, 2, W2, Cin2)                  # (B, H2, 2, W2, 2C)

    # ---- fold the LayerNorm affine into the reduction matmul and permute the
    # weight rows from PyTorch's [x0|x1|x2|x3] concat order to the kernel's
    # [x0|x2|x1|x3] order; one fused (4C, 2C) bf16 weight for a single K=4C dot.
    wg = weight.astype(jnp.float32) * gamma.astype(jnp.float32)[:, None]   # (4C, 2C)
    w_fused = jnp.concatenate(
        [wg[0:C], wg[2 * C:3 * C], wg[C:2 * C], wg[3 * C:4 * C]], axis=0
    ).astype(jnp.bfloat16)                                                  # (4C, 2C)
    bias = (beta.astype(jnp.float32) @ weight.astype(jnp.float32)).reshape(1, Cout2)

    # ---- VMEM- and alignment-aware row-tile selection (dtype-aware).
    in_b = jnp.dtype(x.dtype).itemsize
    out_b = in_b
    # per token: double-buffered input (4C) + output (2C) + in-body temporaries
    # (xe/xo/de/do f32, xn bf16, y/y^T f32) ~= 56*C bytes, rounded up to 64*C.
    bytes_per_token = 2 * Cin4 * in_b + 2 * Cout2 * out_b + 64 * C
    const_bytes = 2 * Cin4 * Cout2 * 2 + 2 * 4 * Cout2    # dbl-buffered bf16 W + bias
    budget = max(bytes_per_token, vmem_block_budget_bytes - const_bytes)
    max_tok = max(W2, min(max_tokens_per_block, budget // bytes_per_token))
    th = _pick_row_tile(H2, W2, max_tok, prefer_split=(B == 1))
    grid = (B, H2 // th)

    out2 = pl.pallas_call(
        _patch_merge_kernel,
        out_shape=jax.ShapeDtypeStruct((B, Cout2, H2 * W2), x.dtype),
        grid_spec=pltpu.PrefetchScalarGridSpec(
            num_scalar_prefetch=0,
            grid=grid,
            in_specs=[
                # one contiguous input stream: th row-pairs of one image
                pl.BlockSpec((None, th, 2, W2, Cin2),
                             lambda b, i: (b, i, 0, 0, 0)),
                # constant operands (revisited every step)
                pl.BlockSpec((Cin4, Cout2), lambda b, i: (0, 0)),
                pl.BlockSpec((1, Cout2), lambda b, i: (0, 0)),
            ],
            out_specs=pl.BlockSpec((None, Cout2, th * W2),
                                   lambda b, i: (b, 0, i)),
        ),
        compiler_params=pltpu.CompilerParams(
            dimension_semantics=("parallel", "parallel"),
            vmem_limit_bytes=48 * 1024 * 1024,
        ),
    )(xr, w_fused, bias)

    # ---- free reshape to the PyTorch NCHW output layout (no transpose left).
    return out2.reshape(B, Cout2, H2, W2)


def _reference_forward(x, gamma, beta, weight):
    """Pure-JAX f32 reference mirroring the PyTorch module exactly."""
    B, C, H, W = x.shape
    xh = jnp.transpose(x, (0, 2, 3, 1))
    x0 = xh[:, 0::2, 0::2, :]
    x1 = xh[:, 1::2, 0::2, :]
    x2 = xh[:, 0::2, 1::2, :]
    x3 = xh[:, 1::2, 1::2, :]
    xcat = jnp.concatenate([x0, x1, x2, x3], axis=-1).reshape(B, -1, 4 * C)
    mean = jnp.mean(xcat, axis=-1, keepdims=True)
    var = jnp.mean((xcat - mean) ** 2, axis=-1, keepdims=True)
    xn = (xcat - mean) / jnp.sqrt(var + LN_EPS) * gamma + beta
    y = xn @ weight
    y = jnp.transpose(y, (0, 2, 1)).reshape(B, 2 * C, H // 2, W // 2)
    return y


if __name__ == "__main__":
    # Small deterministic shapes: B=2, C=4 (dim), H=W=16
    B, C, H, W = 2, 4, 16, 16
    key = jax.random.PRNGKey(0)
    kx, kw, kg, kb = jax.random.split(key, 4)

    x = jax.random.normal(kx, (B, C, H, W), dtype=jnp.float32)

    # Parameters (shapes from the module __init__):
    #  reduction: Linear(4*dim, 2*dim, bias=False) -> weight (4C, 2C) here
    #  norm: LayerNorm(4*dim); non-trivial gamma/beta to exercise the folding.
    bound = 1.0 / jnp.sqrt(4.0 * C)
    weight = jax.random.uniform(kw, (4 * C, 2 * C), dtype=jnp.float32,
                                minval=-bound, maxval=bound)
    gamma = 1.0 + 0.1 * jax.random.normal(kg, (4 * C,), dtype=jnp.float32)
    beta = 0.1 * jax.random.normal(kb, (4 * C,), dtype=jnp.float32)

    out = patch_merging_forward(x, gamma, beta, weight)
    out = jax.block_until_ready(out)

    ref = _reference_forward(x, gamma, beta, weight)
    assert out.shape == (B, 2 * C, H // 2, W // 2), out.shape
    # bf16 MXU path -> looser tolerance than the pure-f32 reference.
    assert jnp.allclose(out, ref, atol=2e-2, rtol=2e-2), \
        float(jnp.max(jnp.abs(out - ref)))

    print("KERNEL_OK")
</pallas_src>

<mosaic_0001>
module attributes {stable_mosaic.version = 11 : i64} {
  func.func @_patch_merge_kernel(%arg0: i32, %arg1: i32, %arg2: memref<1x8x2x8x8xf32, #tpu.memory_space<vmem>>, %arg3: memref<16x8xbf16, #tpu.memory_space<vmem>>, %arg4: memref<1x8xf32, #tpu.memory_space<vmem>>, %arg5: memref<1x8x64xf32, #tpu.memory_space<vmem>>) attributes {dimension_semantics = [#tpu.dimension_semantics<parallel>, #tpu.dimension_semantics<parallel>], iteration_bounds = array<i64: 2, 1>, scalar_prefetch = 0 : i64, scratch_operands = 0 : i64, tpu.core_type = #tpu.core_type<tc>, window_params = [{transform_indices = @transform_0, window_bounds = array<i64: 1, 8, 2, 8, 8>}, {pipeline_mode = #tpu.pipeline_mode<synchronous>, transform_indices = @transform_1, window_bounds = array<i64: 16, 8>}, {pipeline_mode = #tpu.pipeline_mode<synchronous>, transform_indices = @transform_2, window_bounds = array<i64: 1, 8>}, {transform_indices = @transform_3, window_bounds = array<i64: 1, 8, 64>}]} {
    %c0 = arith.constant 0 : index
    %c0_0 = arith.constant 0 : index
    %c0_1 = arith.constant 0 : index
    %c0_2 = arith.constant 0 : index
    %c0_3 = arith.constant 0 : index
    %0 = vector.load %arg2[%c0, %c0_0, %c0_1, %c0_2, %c0_3] : memref<1x8x2x8x8xf32, #tpu.memory_space<vmem>>, vector<1x8x1x8x8xf32>
    %1 = vector.shape_cast %0 : vector<1x8x1x8x8xf32> to vector<8x8x8xf32>
    %c0_4 = arith.constant 0 : index
    %c0_5 = arith.constant 0 : index
    %c1 = arith.constant 1 : index
    %c0_6 = arith.constant 0 : index
    %c0_7 = arith.constant 0 : index
    %2 = vector.load %arg2[%c0_4, %c0_5, %c1, %c0_6, %c0_7] : memref<1x8x2x8x8xf32, #tpu.memory_space<vmem>>, vector<1x8x1x8x8xf32>
    %3 = vector.shape_cast %2 : vector<1x8x1x8x8xf32> to vector<8x8x8xf32>
    %cst = arith.constant dense<0.000000e+00> : vector<8x8xf32>
    %4 = vector.multi_reduction <add>, %1, %cst [2] : vector<8x8x8xf32> to vector<8x8xf32>
    %5 = vector.shape_cast %4 : vector<8x8xf32> to vector<8x8x1xf32>
    %cst_8 = arith.constant dense<0.000000e+00> : vector<8x8xf32>
    %6 = vector.multi_reduction <add>, %3, %cst_8 [2] : vector<8x8x8xf32> to vector<8x8xf32>
    %7 = vector.shape_cast %6 : vector<8x8xf32> to vector<8x8x1xf32>
    %8 = arith.addf %5, %7 : vector<8x8x1xf32>
    %cst_9 = arith.constant 6.250000e-02 : f32
    %9 = vector.broadcast %cst_9 : f32 to vector<8x8x1xf32>
    %10 = arith.mulf %8, %9 : vector<8x8x1xf32>
    %11 = vector.broadcast %10 : vector<8x8x1xf32> to vector<8x8x8xf32>
    %12 = arith.subf %1, %11 : vector<8x8x8xf32>
    %13 = vector.broadcast %10 : vector<8x8x1xf32> to vector<8x8x8xf32>
    %14 = arith.subf %3, %13 : vector<8x8x8xf32>
    %15 = arith.mulf %12, %12 : vector<8x8x8xf32>
    %cst_10 = arith.constant dense<0.000000e+00> : vector<8x8xf32>
    %16 = vector.multi_reduction <add>, %15, %cst_10 [2] : vector<8x8x8xf32> to vector<8x8xf32>
    %17 = vector.shape_cast %16 : vector<8x8xf32> to vector<8x8x1xf32>
    %18 = arith.mulf %14, %14 : vector<8x8x8xf32>
    %cst_11 = arith.constant dense<0.000000e+00> : vector<8x8xf32>
    %19 = vector.multi_reduction <add>, %18, %cst_11 [2] : vector<8x8x8xf32> to vector<8x8xf32>
    %20 = vector.shape_cast %19 : vector<8x8xf32> to vector<8x8x1xf32>
    %21 = arith.addf %17, %20 : vector<8x8x1xf32>
    %cst_12 = arith.constant 6.250000e-02 : f32
    %22 = vector.broadcast %cst_12 : f32 to vector<8x8x1xf32>
    %23 = arith.mulf %21, %22 : vector<8x8x1xf32>
    %cst_13 = arith.constant 9.99999974E-6 : f32
    %24 = vector.broadcast %cst_13 : f32 to vector<8x8x1xf32>
    %25 = arith.addf %23, %24 : vector<8x8x1xf32>
    %26 = math.rsqrt %25 : vector<8x8x1xf32>
    %27 = vector.broadcast %26 : vector<8x8x1xf32> to vector<8x8x8xf32>
    %28 = arith.mulf %12, %27 : vector<8x8x8xf32>
    %29 = arith.truncf %28 : vector<8x8x8xf32> to vector<8x8x8xbf16>
    %30 = vector.broadcast %26 : vector<8x8x1xf32> to vector<8x8x8xf32>
    %31 = arith.mulf %14, %30 : vector<8x8x8xf32>
    %32 = arith.truncf %31 : vector<8x8x8xf32> to vector<8x8x8xbf16>
    %33 = tpu.concatenate %29, %32 in 2 : vector<8x8x8xbf16>, vector<8x8x8xbf16> -> vector<8x8x16xbf16>
    %34 = vector.shape_cast %33 : vector<8x8x16xbf16> to vector<64x16xbf16>
    %c0_14 = arith.constant 0 : index
    %c0_15 = arith.constant 0 : index
    %35 = vector.load %arg3[%c0_14, %c0_15] : memref<16x8xbf16, #tpu.memory_space<vmem>>, vector<16x8xbf16>
    %cst_16 = arith.constant dense<0.000000e+00> : vector<64x8xf32>
    %36 = tpu.matmul %34, %35, %cst_16 {dimension_numbers = #tpu.dot_dimension_numbers<[1], [0], [0], [1], [0, 0, 1, 1], [], []>} : vector<64x16xbf16>, vector<16x8xbf16>, vector<64x8xf32> -> vector<64x8xf32>
    %c0_17 = arith.constant 0 : index
    %c0_18 = arith.constant 0 : index
    %37 = vector.load %arg4[%c0_17, %c0_18] : memref<1x8xf32, #tpu.memory_space<vmem>>, vector<1x8xf32>
    %38 = vector.broadcast %37 : vector<1x8xf32> to vector<64x8xf32>
    %39 = arith.addf %36, %38 : vector<64x8xf32>
    %40 = tpu.transpose %39, [1, 0] : vector<64x8xf32> -> vector<8x64xf32>
    %c0_19 = arith.constant 0 : index
    %c0_20 = arith.constant 0 : index
    %c0_21 = arith.constant 0 : index
    %41 = vector.load %arg5[%c0_19, %c0_20, %c0_21] : memref<1x8x64xf32, #tpu.memory_space<vmem>>, vector<1x8x64xf32>
    %42 = vector.shape_cast %41 : vector<1x8x64xf32> to vector<8x64xf32>
    %43 = vector.shape_cast %40 : vector<8x64xf32> to vector<1x8x64xf32>
    tpu.vector_store %arg5[%c0_19, %c0_20, %c0_21], %43 {strides = array<i32>} : memref<1x8x64xf32, #tpu.memory_space<vmem>>, vector<1x8x64xf32>,
    return
  }
  func.func @transform_0(%arg0: i32, %arg1: i32) -> (i32, i32, i32, i32, i32) {
    %c0_i32 = arith.constant 0 : i32
    %c0_i32_0 = arith.constant 0 : i32
    %c0_i32_1 = arith.constant 0 : i32
    %c0_i32_2 = arith.constant 0 : i32
    return %arg0, %arg1, %c0_i32, %c0_i32_0, %c0_i32_1 : i32, i32, i32, i32, i32
  }
  func.func @transform_1(%arg0: i32, %arg1: i32) -> (i32, i32) {
    %c0_i32 = arith.constant 0 : i32
    %c0_i32_0 = arith.constant 0 : i32
    %c0_i32_1 = arith.constant 0 : i32
    return %c0_i32, %c0_i32_0 : i32, i32
  }
  func.func @transform_2(%arg0: i32, %arg1: i32) -> (i32, i32) {
    %c0_i32 = arith.constant 0 : i32
    %c0_i32_0 = arith.constant 0 : i32
    %c0_i32_1 = arith.constant 0 : i32
    return %c0_i32, %c0_i32_0 : i32, i32
  }
  func.func @transform_3(%arg0: i32, %arg1: i32) -> (i32, i32, i32) {
    %c0_i32 = arith.constant 0 : i32
    %c0_i32_0 = arith.constant 0 : i32
    return %arg0, %c0_i32, %arg1 : i32, i32, i32
  }
}

</mosaic_0001>

<llo_original>
// kernel: tpu_custom_call.1
$region0: #{tpu_custom_call.1}
  #allocation0 [shape = 'u32[]', space=smem, size = 0x4, offset = 0x4, fixed_abs, tag = 'smem constant byte address 0x4 - core index']
  #allocation1 [shape = 'u32[144,128]{1,0:T(1,128)}', space=vmem, size = 0x12000, scoped, tag = 'internal scratch']
  %s0 = inlined_call_operand.hbm [shape: f32[2,8,2,8,8], index: 0, kind: input, shape index: {}]
  %s1 = inlined_call_operand.vmem [shape: bf16[16,8], index: 1, kind: input, shape index: {}]
  %s2 = inlined_call_operand.vmem [shape: f32[1,8], index: 2, kind: input, shape index: {}]
  %s3 = inlined_call_operand.hbm [shape: f32[2,8,64], index: 3, kind: output, shape index: {}]
  %s4 = sld [smem:[#allocation0]]
  $region49: #{tpu_custom_call.1} parent=0
    _
  %s6 = ssub.s32 1, %s4
  %s7 = scalar_select 0, %s6, %s4
  $region1: #{tpu_custom_call.1} parent=0
    #allocation2 [shape = 'u8[131072]{0}', space=vmem, size = 0x20000, scoped, tag = 'input window, operand 0']
    #allocation3 [shape = 's32[2]{0}', space=sflag, size = 0x8, scoped, tag = 'scoped memory for tpu_custom_call.1']
    #allocation4 [shape = 's32[2]{0}', space=sflag, size = 0x8, scoped, tag = 'scoped memory for tpu_custom_call.1']
    #allocation5 [shape = 'u8[8192]{0}', space=vmem, size = 0x2000, scoped, tag = 'output window, operand 0']
    %8 = vsyncpa [#allocation3], 0
    %s9 = scalar_lea.sflag [#allocation3], 1
    %10 = vsyncpa %s9, 0
    %11 = vsyncpa [#allocation4], 0
    %s12 = scalar_lea.sflag [#allocation4], 1
    %13 = vsyncpa %s12, 0
    loop: start=0, step=1, limit=4
    $region2: #{tpu_custom_call.1} parent=1 // loop_pre_header
      _
    $region3: #{tpu_custom_call.1} parent=1 // loop_header
      %s15 = sphi 0, %s19
      %p16 = scmp.ge.s32.totalorder %s15, 4
      %s22 = sphi 0, %s34
      %s23 = sphi 0, %s30
      %s24 = sphi 0, %s22
      %s25 = sphi 0, %s23
      %s26 = sphi 0, %s24
      %s27 = sphi 0, %s25
      %s39 = sphi 0, %s41
      %s42 = sphi 0, %s39
      %s43 = sphi 0, %s42
      %s59 = sphi 0, %s43
      %s63 = sphi 0, %s63
      %s65 = sphi 0, %s63
      %s66 = sphi 0, %s65
      %s80 = sphi 0, %s66
      %s84 = sphi 0, %s84
      %s86 = sphi 0, %s84
      %s87 = sphi 0, %s86
      %s101 = sphi 0, %s87
      %s109 = sphi 0, %s111
      %s112 = sphi 0, %s109
      %s113 = sphi 0, %s112
      %s129 = sphi 0, %s113
    $region4: #{tpu_custom_call.1} parent=1 // loop_header_branch
      %18 = sbr.rel (%p16) target = $region8
    $region5: #{tpu_custom_call.1} parent=1 // loop_body
      %s20 = ssub.s32 %s15, 1
      %s21 = ssub.s32 %s15, 2
      %s28 = sadd.s32 1, %s23
      %p29 = scmp.ge.s32.totalorder %s28, 1
      %s30 = scalar_select %p29, 0, %s28
      %s31 = sadd.s32 1, %s22
      %s32 = scalar_select %p29, %s31, %s22
      %p33 = scmp.ge.s32.totalorder %s32, 2
      %s34 = scalar_select %p33, 0, %s32
      %s35 = ssub.s32 %s22, %s34
      %s36 = ssub.s32 %s23, %s30
      %s37 = sor.u32 %s35, %s36
      %p38 = scmp.eq.s32.totalorder %s37, 0
      %s40 = sadd.s32 %s39, 1
      %s41 = scalar_select %p38, %s39, %s40
      %p44 = pneg %p38
      %p45 = scmp.eq.s32.totalorder %s15, 1
      %p46 = por %p44, %p45
      %p47 = scmp.ne.s32.totalorder %s39, %s42
      %p48 = scmp.eq.s32.totalorder %s15, 0
      %p49 = por %p47, %p48
      %p50 = scmp.ne.s32.totalorder %s39, %s42
      %p51 = scmp.eq.s32.totalorder %s20, 1
      %p52 = por %p50, %p51
      %p53 = scmp.ne.s32.totalorder %s42, %s43
      %p54 = scmp.eq.s32.totalorder %s20, 0
      %p55 = por %p53, %p54
      %p56 = scmp.ne.s32.totalorder %s42, %s43
      %p57 = scmp.eq.s32.totalorder %s21, 1
      %p58 = por %p56, %p57
      %p60 = scmp.ne.s32.totalorder %s43, %s59
      %p61 = scmp.eq.s32.totalorder %s21, 0
      %p62 = por %p60, %p61
      %s64 = sadd.s32 %s63, 1
      %p67 = scmp.eq.s32.totalorder %s15, 1
      %p68 = scmp.ne.s32.totalorder %s63, %s65
      %p69 = scmp.eq.s32.totalorder %s15, 0
      %p70 = por %p68, %p69
      %p71 = scmp.ne.s32.totalorder %s63, %s65
      %p72 = scmp.eq.s32.totalorder %s20, 1
      %p73 = por %p71, %p72
      %p74 = scmp.ne.s32.totalorder %s65, %s66
      %p75 = scmp.eq.s32.totalorder %s20, 0
      %p76 = por %p74, %p75
      %p77 = scmp.ne.s32.totalorder %s65, %s66
      %p78 = scmp.eq.s32.totalorder %s21, 1
      %p79 = por %p77, %p78
      %p81 = scmp.ne.s32.totalorder %s66, %s80
      %p82 = scmp.eq.s32.totalorder %s21, 0
      %p83 = por %p81, %p82
      %s85 = sadd.s32 %s84, 1
      %p88 = scmp.eq.s32.totalorder %s15, 1
      %p89 = scmp.ne.s32.totalorder %s84, %s86
      %p90 = scmp.eq.s32.totalorder %s15, 0
      %p91 = por %p89, %p90
      %p92 = scmp.ne.s32.totalorder %s84, %s86
      %p93 = scmp.eq.s32.totalorder %s20, 1
      %p94 = por %p92, %p93
      %p95 = scmp.ne.s32.totalorder %s86, %s87
      %p96 = scmp.eq.s32.totalorder %s20, 0
      %p97 = por %p95, %p96
      %p98 = scmp.ne.s32.totalorder %s86, %s87
      %p99 = scmp.eq.s32.totalorder %s21, 1
      %p100 = por %p98, %p99
      %p102 = scmp.ne.s32.totalorder %s87, %s101
      %p103 = scmp.eq.s32.totalorder %s21, 0
      %p104 = por %p102, %p103
      %s105 = ssub.s32 %s22, %s34
      %s106 = ssub.s32 %s23, %s30
      %s107 = sor.u32 %s105, %s106
      %p108 = scmp.eq.s32.totalorder %s107, 0
      %s110 = sadd.s32 %s109, 1
      %s111 = scalar_select %p108, %s109, %s110
      %p114 = pneg %p108
      %p115 = scmp.eq.s32.totalorder %s15, 1
      %p116 = por %p114, %p115
      %p117 = scmp.ne.s32.totalorder %s109, %s112
      %p118 = scmp.eq.s32.totalorder %s15, 0
      %p119 = por %p117, %p118
      %p120 = scmp.ne.s32.totalorder %s109, %s112
      %p121 = scmp.eq.s32.totalorder %s20, 1
      %p122 = por %p120, %p121
      %p123 = scmp.ne.s32.totalorder %s112, %s113
      %p124 = scmp.eq.s32.totalorder %s20, 0
      %p125 = por %p123, %p124
      %p126 = scmp.ne.s32.totalorder %s112, %s113
      %p127 = scmp.eq.s32.totalorder %s21, 1
      %p128 = por %p126, %p127
      %p130 = scmp.ne.s32.totalorder %s113, %s129
      %p131 = scmp.eq.s32.totalorder %s21, 0
      %p132 = por %p130, %p131
      %p133 = scmp.le.s32.totalorder 1, %s15
      %p134 = scmp.lt.s32.totalorder %s15, 3
      %p135 = pnand %p133, %p134
      %p136 = pneg %p135
      // Predicated region
      $region9: #{tpu_custom_call.1} parent=5 // pred_check
        _
      $region10: #{tpu_custom_call.1} parent=5 // pred_check_branch
        %138 = sbr.rel (%p135) target = $region12
      $region11: #{tpu_custom_call.1} parent=5 // pred_region
        %s139 = ssub.s32 %s15, 1
        // Predicated region
        $region13: #{tpu_custom_call.1} parent=11 // pred_check
          %p140 = pneg %p76
        $region14: #{tpu_custom_call.1} parent=11 // pred_check_branch
          %142 = sbr.rel (%p140) target = $region16
        $region15: #{tpu_custom_call.1} parent=11 // pred_region
          _
        $region16: #{tpu_custom_call.1} parent=11 // pred_fallthru
          _
        // Predicated region
        $region17: #{tpu_custom_call.1} parent=11 // pred_check
          %p143 = pneg %p97
        $region18: #{tpu_custom_call.1} parent=11 // pred_check_branch
          %145 = sbr.rel (%p143) target = $region20
        $region19: #{tpu_custom_call.1} parent=11 // pred_region
          _
        $region20: #{tpu_custom_call.1} parent=11 // pred_fallthru
          _
      $region12: #{tpu_custom_call.1} parent=5 // pred_fallthru
        _
      %p146 = scmp.lt.s32.totalorder %s15, 2
      // Predicated region
      $region21: #{tpu_custom_call.1} parent=5 // pred_check
        %p147 = pneg %p146
      $region22: #{tpu_custom_call.1} parent=5 // pred_check_branch
        %149 = sbr.rel (%p147) target = $region24
      $region23: #{tpu_custom_call.1} parent=5 // pred_region
        // Predicated region
        $region25: #{tpu_custom_call.1} parent=23 // pred_check
          %p150 = pneg %p49
        $region26: #{tpu_custom_call.1} parent=23 // pred_check_branch
          %152 = sbr.rel (%p150) target = $region28
        $region27: #{tpu_custom_call.1} parent=23 // pred_region
          %s153 = sand.u32 %s39, 1
          %s154 = scalar_lea.sflag [#allocation3], %s153
          %s155 = sand.u32 %s39, 1
          %s156 = smul.addr %s155, 128
          %s157 = scalar_lea.vmem [#allocation2], %s156
          %s158 = smul.u32 8, %s23
          %s160 = ssub.s32 2048, 2048
          %161 = vsyncadd %s154, %s160
          %s162 = smul.addr %s158, 2
          %s163 = smul.addr %s22, 16
          %s164 = sadd.s32 %s162, %s163
          %s165 = smul.addr %s164, 128
          %s166 = scalar_lea.hbm %s0, %s165
          %s167 = sshll.u32 %s157, 4
          %s168 = int_to_ptr.vmem [resolvable:$true] %s167
          %173 = dma.hbm_to_vmem [thread:$0]  %s166, 2048, %s168, %s154, 128, 128, 8
        $region28: #{tpu_custom_call.1} parent=23 // pred_fallthru
          _
      $region24: #{tpu_custom_call.1} parent=5 // pred_fallthru
        _
      %p174 = scmp.le.s32.totalorder 1, %s15
      %p175 = scmp.lt.s32.totalorder %s15, 3
      %p176 = pnand %p174, %p175
      %p177 = pneg %p176
      // Predicated region
      $region29: #{tpu_custom_call.1} parent=5 // pred_check
        _
      $region30: #{tpu_custom_call.1} parent=5 // pred_check_branch
        %179 = sbr.rel (%p176) target = $region32
      $region31: #{tpu_custom_call.1} parent=5 // pred_region
        %s180 = ssub.s32 %s15, 1
        %s181 = sand.u32 %s42, 1
        %s182 = scalar_lea.sflag [#allocation3], %s181
        %s183 = sand.u32 %s42, 1
        %s184 = smul.addr %s183, 128
        %s185 = scalar_lea.vmem [#allocation2], %s184
        // Predicated region
        $region33: #{tpu_custom_call.1} parent=31 // pred_check
          %p186 = pneg %p55
        $region34: #{tpu_custom_call.1} parent=31 // pred_check_branch
          %188 = sbr.rel (%p186) target = $region36
        $region35: #{tpu_custom_call.1} parent=31 // pred_region
          %189 = dma.done %s182, 2048
        $region36: #{tpu_custom_call.1} parent=31 // pred_fallthru
          _
        %s190 = sand.u32 %s42, 1
        %s191 = scalar_lea.sflag [#allocation3], %s190
        %s192 = sand.u32 %s42, 1
        %s193 = smul.addr %s192, 128
        %s194 = scalar_lea.vmem [#allocation2], %s193
        %p195 = pneg %p55
        %p196 = pneg %p52
        %p197 = pneg %p76
        %p198 = pneg %p73
        %p199 = pneg %p97
        %p200 = pneg %p94
        %p201 = pneg %p125
        %p202 = pneg %p122
        %s203 = sand.u32 %s112, 1
        %s204 = scalar_lea.sflag [#allocation4], %s203
        %s205 = sand.u32 %s112, 1
        %s206 = smul.addr %s205, 8
        %s207 = scalar_lea.vmem [#allocation5], %s206
        %s208 = smul.u32 8, %s25
        %v210 = vld [vmem:[%s185] sm:$0xff]
        %v211 = vld [vmem:[%s185 + $0x10] sm:$0xff]
        %v212 = vld [vmem:[%s185 + $0x20] sm:$0xff]
        %v213 = vld [vmem:[%s185 + $0x30] sm:$0xff]
        %v214 = vld [vmem:[%s185 + $0x40] sm:$0xff]
        %v215 = vld [vmem:[%s185 + $0x50] sm:$0xff]
        %v216 = vld [vmem:[%s185 + $0x60] sm:$0xff]
        %v217 = vld [vmem:[%s185 + $0x70] sm:$0xff]
        %s218 = scalar_lea.vmem %s185, 8 [#allocation2]
        %v219 = vld [vmem:[%s218] sm:$0xff]
        %v220 = vld [vmem:[%s218 + $0x10] sm:$0xff]
        %v221 = vld [vmem:[%s218 + $0x20] sm:$0xff]
        %v222 = vld [vmem:[%s218 + $0x30] sm:$0xff]
        %v223 = vld [vmem:[%s218 + $0x40] sm:$0xff]
        %v224 = vld [vmem:[%s218 + $0x50] sm:$0xff]
        %v225 = vld [vmem:[%s218 + $0x60] sm:$0xff]
        %v226 = vld [vmem:[%s218 + $0x70] sm:$0xff]
        %vm227 = vcmask 64512
        %v228 = vsel %vm227, %v210, 0.0
        %229 = vadd.xlane.f32.xlu0 %v228
        %v230 = vpop.xlane.xlu0 %229
        %v231 = vsel %vm227, %v211, 0.0
        %232 = vadd.xlane.f32.xlu0 %v231
        %v233 = vpop.xlane.xlu0 %232
        %v234 = vsel %vm227, %v212, 0.0
        %235 = vadd.xlane.f32.xlu0 %v234
        %v236 = vpop.xlane.xlu0 %235
        %v237 = vsel %vm227, %v213, 0.0
        %238 = vadd.xlane.f32.xlu0 %v237
        %v239 = vpop.xlane.xlu0 %238
        %v240 = vsel %vm227, %v214, 0.0
        %241 = vadd.xlane.f32.xlu0 %v240
        %v242 = vpop.xlane.xlu0 %241
        %v243 = vsel %vm227, %v215, 0.0
        %244 = vadd.xlane.f32.xlu0 %v243
        %v245 = vpop.xlane.xlu0 %244
        %v246 = vsel %vm227, %v216, 0.0
        %247 = vadd.xlane.f32.xlu0 %v246
        %v248 = vpop.xlane.xlu0 %247
        %v249 = vsel %vm227, %v217, 0.0
        %250 = vadd.xlane.f32.xlu0 %v249
        %v251 = vpop.xlane.xlu0 %250
        %v252 = vsel %vm227, %v219, 0.0
        %253 = vadd.xlane.f32.xlu0 %v252
        %v254 = vpop.xlane.xlu0 %253
        %v255 = vsel %vm227, %v220, 0.0
        %256 = vadd.xlane.f32.xlu0 %v255
        %v257 = vpop.xlane.xlu0 %256
        %v258 = vsel %vm227, %v221, 0.0
        %259 = vadd.xlane.f32.xlu0 %v258
        %v260 = vpop.xlane.xlu0 %259
        %v261 = vsel %vm227, %v222, 0.0
        %262 = vadd.xlane.f32.xlu0 %v261
        %v263 = vpop.xlane.xlu0 %262
        %v264 = vsel %vm227, %v223, 0.0
        %265 = vadd.xlane.f32.xlu0 %v264
        %v266 = vpop.xlane.xlu0 %265
        %v267 = vsel %vm227, %v224, 0.0
        %268 = vadd.xlane.f32.xlu0 %v267
        %v269 = vpop.xlane.xlu0 %268
        %v270 = vsel %vm227, %v225, 0.0
        %271 = vadd.xlane.f32.xlu0 %v270
        %v272 = vpop.xlane.xlu0 %271
        %v273 = vsel %vm227, %v226, 0.0
        %274 = vadd.xlane.f32.xlu0 %v273
        %v275 = vpop.xlane.xlu0 %274
        %v276 = vadd.f32 %v230, %v254
        %v277 = vadd.f32 %v233, %v257
        %v278 = vadd.f32 %v236, %v260
        %v279 = vadd.f32 %v239, %v263
        %v280 = vadd.f32 %v242, %v266
        %v281 = vadd.f32 %v245, %v269
        %v282 = vadd.f32 %v248, %v272
        %v283 = vadd.f32 %v251, %v275
        %v284 = vmul.f32 %v276, 0.0625
        %v285 = vmul.f32 %v277, 0.0625
        %v286 = vmul.f32 %v278, 0.0625
        %v287 = vmul.f32 %v279, 0.0625
        %v288 = vmul.f32 %v280, 0.0625
        %v289 = vmul.f32 %v281, 0.0625
        %v290 = vmul.f32 %v282, 0.0625
        %v291 = vmul.f32 %v283, 0.0625
        %v292 = vsub.f32 %v210, %v284
        %v293 = vsub.f32 %v211, %v285
        %v294 = vsub.f32 %v212, %v286
        %v295 = vsub.f32 %v213, %v287
        %v296 = vsub.f32 %v214, %v288
        %v297 = vsub.f32 %v215, %v289
        %v298 = vsub.f32 %v216, %v290
        %v299 = vsub.f32 %v217, %v291
        %v300 = vsub.f32 %v219, %v284
        %v301 = vsub.f32 %v220, %v285
        %v302 = vsub.f32 %v221, %v286
        %v303 = vsub.f32 %v222, %v287
        %v304 = vsub.f32 %v223, %v288
        %v305 = vsub.f32 %v224, %v289
        %v306 = vsub.f32 %v225, %v290
        %v307 = vsub.f32 %v226, %v291
        %v308 = vmul.f32 %v292, %v292
        %v309 = vmul.f32 %v293, %v293
        %v310 = vmul.f32 %v294, %v294
        %v311 = vmul.f32 %v295, %v295
        %v312 = vmul.f32 %v296, %v296
        %v313 = vmul.f32 %v297, %v297
        %v314 = vmul.f32 %v298, %v298
        %v315 = vmul.f32 %v299, %v299
        %v316 = vsel %vm227, %v308, 0.0
        %317 = vadd.xlane.f32.xlu0 %v316
        %v318 = vpop.xlane.xlu0 %317
        %v319 = vsel %vm227, %v309, 0.0
        %320 = vadd.xlane.f32.xlu0 %v319
        %v321 = vpop.xlane.xlu0 %320
        %v322 = vsel %vm227, %v310, 0.0
        %323 = vadd.xlane.f32.xlu0 %v322
        %v324 = vpop.xlane.xlu0 %323
        %v325 = vsel %vm227, %v311, 0.0
        %326 = vadd.xlane.f32.xlu0 %v325
        %v327 = vpop.xlane.xlu0 %326
        %v328 = vsel %vm227, %v312, 0.0
        %329 = vadd.xlane.f32.xlu0 %v328
        %v330 = vpop.xlane.xlu0 %329
        %v331 = vsel %vm227, %v313, 0.0
        %332 = vadd.xlane.f32.xlu0 %v331
        %v333 = vpop.xlane.xlu0 %332
        %v334 = vsel %vm227, %v314, 0.0
        %335 = vadd.xlane.f32.xlu0 %v334
        %v336 = vpop.xlane.xlu0 %335
        %v337 = vsel %vm227, %v315, 0.0
        %338 = vadd.xlane.f32.xlu0 %v337
        %v339 = vpop.xlane.xlu0 %338
        %v340 = vmul.f32 %v300, %v300
        %v341 = vmul.f32 %v301, %v301
        %v342 = vmul.f32 %v302, %v302
        %v343 = vmul.f32 %v303, %v303
        %v344 = vmul.f32 %v304, %v304
        %v345 = vmul.f32 %v305, %v305
        %v346 = vmul.f32 %v306, %v306
        %v347 = vmul.f32 %v307, %v307
        %v348 = vsel %vm227, %v340, 0.0
        %349 = vadd.xlane.f32.xlu0 %v348
        %v350 = vpop.xlane.xlu0 %349
        %v351 = vsel %vm227, %v341, 0.0
        %352 = vadd.xlane.f32.xlu0 %v351
        %v353 = vpop.xlane.xlu0 %352
        %v354 = vsel %vm227, %v342, 0.0
        %355 = vadd.xlane.f32.xlu0 %v354
        %v356 = vpop.xlane.xlu0 %355
        %v357 = vsel %vm227, %v343, 0.0
        %358 = vadd.xlane.f32.xlu0 %v357
        %v359 = vpop.xlane.xlu0 %358
        %v360 = vsel %vm227, %v344, 0.0
        %361 = vadd.xlane.f32.xlu0 %v360
        %v362 = vpop.xlane.xlu0 %361
        %v363 = vsel %vm227, %v345, 0.0
        %364 = vadd.xlane.f32.xlu0 %v363
        %v365 = vpop.xlane.xlu0 %364
        %v366 = vsel %vm227, %v346, 0.0
        %367 = vadd.xlane.f32.xlu0 %v366
        %v368 = vpop.xlane.xlu0 %367
        %v369 = vsel %vm227, %v347, 0.0
        %370 = vadd.xlane.f32.xlu0 %v369
        %v371 = vpop.xlane.xlu0 %370
        %v372 = vadd.f32 %v318, %v350
        %v373 = vadd.f32 %v321, %v353
        %v374 = vadd.f32 %v324, %v356
        %v375 = vadd.f32 %v327, %v359
        %v376 = vadd.f32 %v330, %v362
        %v377 = vadd.f32 %v333, %v365
        %v378 = vadd.f32 %v336, %v368
        %v379 = vadd.f32 %v339, %v371
        %v380 = vmul.f32 %v372, 0.0625
        %v381 = vmul.f32 %v373, 0.0625
        %v382 = vmul.f32 %v374, 0.0625
        %v383 = vmul.f32 %v375, 0.0625
        %v384 = vmul.f32 %v376, 0.0625
        %v385 = vmul.f32 %v377, 0.0625
        %v386 = vmul.f32 %v378, 0.0625
        %v387 = vmul.f32 %v379, 0.0625
        %v388 = vadd.f32 %v380, 1e-05
        %v389 = vadd.f32 %v381, 1e-05
        %v390 = vadd.f32 %v382, 1e-05
        %v391 = vadd.f32 %v383, 1e-05
        %v392 = vadd.f32 %v384, 1e-05
        %v393 = vadd.f32 %v385, 1e-05
        %v394 = vadd.f32 %v386, 1e-05
        %v395 = vadd.f32 %v387, 1e-05
        %v396 = vrsqrt.pop %v388
        %v397 = vrsqrt.pop %v389
        %v398 = vrsqrt.pop %v390
        %v399 = vrsqrt.pop %v391
        %v400 = vrsqrt.pop %v392
        %v401 = vrsqrt.pop %v393
        %v402 = vrsqrt.pop %v394
        %v403 = vrsqrt.pop %v395
        %v404 = vmul.f32 %v292, %v396
        %v405 = vmul.f32 %v293, %v397
        %v406 = vmul.f32 %v294, %v398
        %v407 = vmul.f32 %v295, %v399
        %v408 = vmul.f32 %v296, %v400
        %v409 = vmul.f32 %v297, %v401
        %v410 = vmul.f32 %v298, %v402
        %v411 = vmul.f32 %v299, %v403
        %v412 = vpack.c.bf16 %v404, %v404
        %v413 = vpack.c.bf16 %v405, %v405
        %v414 = vpack.c.bf16 %v406, %v406
        %v415 = vpack.c.bf16 %v407, %v407
        %v416 = vpack.c.bf16 %v408, %v408
        %v417 = vpack.c.bf16 %v409, %v409
        %v418 = vpack.c.bf16 %v410, %v410
        %v419 = vpack.c.bf16 %v411, %v411
        %v420 = vmul.f32 %v300, %v396
        %v421 = vmul.f32 %v301, %v397
        %v422 = vmul.f32 %v302, %v398
        %v423 = vmul.f32 %v303, %v399
        %v424 = vmul.f32 %v304, %v400
        %v425 = vmul.f32 %v305, %v401
        %v426 = vmul.f32 %v306, %v402
        %v427 = vmul.f32 %v307, %v403
        %v428 = vpack.c.bf16 %v420, %v420
        %v429 = vpack.c.bf16 %v421, %v421
        %v430 = vpack.c.bf16 %v422, %v422
        %v431 = vpack.c.bf16 %v423, %v423
        %v432 = vpack.c.bf16 %v424, %v424
        %v433 = vpack.c.bf16 %v425, %v425
        %v434 = vpack.c.bf16 %v426, %v426
        %v435 = vpack.c.bf16 %v427, %v427
        %444 = vrot.lane.b32.xlu0 %v428, 8
        %v445 = vpop.permute.xlu0 %444
        %446 = vrot.lane.b32.xlu0 %v429, 8
        %v447 = vpop.permute.xlu0 %446
        %448 = vrot.lane.b32.xlu0 %v430, 8
        %v449 = vpop.permute.xlu0 %448
        %450 = vrot.lane.b32.xlu0 %v431, 8
        %v451 = vpop.permute.xlu0 %450
        %452 = vrot.lane.b32.xlu0 %v432, 8
        %v453 = vpop.permute.xlu0 %452
        %454 = vrot.lane.b32.xlu0 %v433, 8
        %v455 = vpop.permute.xlu0 %454
        %456 = vrot.lane.b32.xlu0 %v434, 8
        %v457 = vpop.permute.xlu0 %456
        %458 = vrot.lane.b32.xlu0 %v435, 8
        %v459 = vpop.permute.xlu0 %458
        %v462 = vsel %vm227, %v412, %v445
        %v465 = vsel %vm227, %v413, %v447
        %v468 = vsel %vm227, %v414, %v449
        %v471 = vsel %vm227, %v415, %v451
        %v474 = vsel %vm227, %v416, %v453
        %v477 = vsel %vm227, %v417, %v455
        %v480 = vsel %vm227, %v418, %v457
        %v483 = vsel %vm227, %v419, %v459
        %v484 = vld [vmem:[%s1] sm:$0xf]
        %v485 = vld [vmem:[%s1 + $0x4] sm:$0xf]
        %v486 = vld [vmem:[%s2] sm:$0x1]
        %v488 = vlaneseq
        %v489 = vshrl.u32 %v488, 7
        %v490 = vsub.s32 0, %v489
        %v491 = vrot.slane %v486, %v490
        %v501 = vunpack.c.l.b16 %v462
        %v502 = vunpack.c.l.b16 %v465
        %v503 = vunpack.c.l.b16 %v468
        %v504 = vunpack.c.l.b16 %v471
        %v505 = vunpack.c.l.b16 %v474
        %v506 = vunpack.c.l.b16 %v477
        %v507 = vunpack.c.l.b16 %v480
        %v508 = vunpack.c.l.b16 %v483
        %v509 = vpack.c.b16 %v502, %v501
        %v510 = vpack.c.b16 %v504, %v503
        %v511 = vpack.c.b16 %v506, %v505
        %v512 = vpack.c.b16 %v508, %v507
        %v515 = vunpack.c.l.b16 %v484
        %v516 = vunpack.c.l.b16 %v485
        %v517 = vpack.c.b16 %v516, %v515
        %vm519 = vcmask 130048
        %v521 = vsel %vm519, %v509, 0
        %v524 = vsel %vm519, %v510, 0
        %v527 = vsel %vm519, %v511, 0
        %v530 = vsel %vm519, %v512, 0
        %532 = vmatprep.subr.bf16.mxu0 0
        %533 = vmatpush1.bf16.msra.mxu0 %v517
        %534 = vmatprep.subr.bf16.mxu0 0
        %535 = vmatpush1.bf16.msra.mxu0 0
        %536 = vmatprep.subr.bf16.mxu0 0
        %537 = vmatpush1.bf16.msra.mxu0 0
        %538 = vmatprep.subr.bf16.mxu0 0
        %539 = vmatpush1.bf16.msra.mxu0 0
        %540 = vmatprep.subr.bf16.mxu0 0
        %541 = vmatpush1.bf16.msra.mxu0 0
        %542 = vmatprep.subr.bf16.mxu0 0
        %543 = vmatpush1.bf16.msra.mxu0 0
        %544 = vmatprep.subr.bf16.mxu0 0
        %545 = vmatpush1.bf16.msra.mxu0 0
        %546 = vmatprep.subr.bf16.mxu0 0
        %547 = vmatpush1.bf16.msra.mxu0 0
        %548 = vmatprep.subr.bf16.mxu0 0
        %549 = vmatpush1.bf16.msra.mxu0 0
        %550 = vmatprep.subr.bf16.mxu0 0
        %551 = vmatpush1.bf16.msra.mxu0 0
        %552 = vmatprep.subr.bf16.mxu0 0
        %553 = vmatpush1.bf16.msra.mxu0 0
        %554 = vmatprep.subr.bf16.mxu0 0
        %555 = vmatpush1.bf16.msra.mxu0 0
        %556 = vmatprep.subr.bf16.mxu0 0
        %557 = vmatpush1.bf16.msra.mxu0 0
        %558 = vmatprep.subr.bf16.mxu0 0
        %559 = vmatpush1.bf16.msra.mxu0 0
        %560 = vmatprep.subr.bf16.mxu0 0
        %561 = vmatpush1.bf16.msra.mxu0 0
        %562 = vmatprep.subr.bf16.mxu0 0
        %563 = vmatpush1.bf16.msra.mxu0 0
        %564 = vmatprep.mubr.bf16.mxu0 0
        %565 = vmatmul.mubr.bf16.gmra.mrb[0].mxu0 %v521
        %v566 = vpop.f32.mrb[0].mxu0
        %v567 = vadd.f32 %v491, %v566
        %v568 = vpop.f32.mrb[0].mxu0
        %v569 = vpop.f32.mrb[0].mxu0
        %v570 = vadd.f32 %v491, %v569
        %v571 = vpop.f32.mrb[0].mxu0
        %572 = vmatprep.mubr.bf16.mxu0 0
        %573 = vmatmul.mubr.bf16.gmra.mrb[0].mxu0 %v524
        %v574 = vpop.f32.mrb[0].mxu0
        %v575 = vadd.f32 %v491, %v574
        %v576 = vpop.f32.mrb[0].mxu0
        %v577 = vpop.f32.mrb[0].mxu0
        %v578 = vadd.f32 %v491, %v577
        %v579 = vpop.f32.mrb[0].mxu0
        %580 = vmatprep.mubr.bf16.mxu0 0
        %581 = vmatmul.mubr.bf16.gmra.mrb[0].mxu0 %v527
        %v582 = vpop.f32.mrb[0].mxu0
        %v583 = vadd.f32 %v491, %v582
        %v584 = vpop.f32.mrb[0].mxu0
        %v585 = vpop.f32.mrb[0].mxu0
        %v586 = vadd.f32 %v491, %v585
        %v587 = vpop.f32.mrb[0].mxu0
        %588 = vmatprep.mubr.bf16.mxu0 0
        %589 = vmatmul.mubr.bf16.gmra.mrb[0].mxu0 %v530
        %v590 = vpop.f32.mrb[0].mxu0
        %v591 = vadd.f32 %v491, %v590
        %v592 = vpop.f32.mrb[0].mxu0
        %v593 = vpop.f32.mrb[0].mxu0
        %v594 = vadd.f32 %v491, %v593
        %v595 = vpop.f32.mrb[0].mxu0
        %596 = vdwg.mxu0
        %597 = vxpose.xlu0.b32.start [1/16] %v567, 128
        %598 = vxpose.xlu0.b32.cont [2/16] %v570, 128
        %599 = vxpose.xlu0.b32.cont [3/16] %v575, 128
        %600 = vxpose.xlu0.b32.cont [4/16] %v578, 128
        %601 = vxpose.xlu0.b32.cont [5/16] %v583, 128
        %602 = vxpose.xlu0.b32.cont [6/16] %v586, 128
        %603 = vxpose.xlu0.b32.cont [7/16] %v591, 128
        %604 = vxpose.xlu0.b32.cont [8/16] %v594, 128
        %605 = vxpose.xlu0.b32.cont [9/16] 0.0, 128
        %606 = vxpose.xlu0.b32.cont [10/16] 0.0, 128
        %607 = vxpose.xlu0.b32.cont [11/16] 0.0, 128
        %608 = vxpose.xlu0.b32.cont [12/16] 0.0, 128
        %609 = vxpose.xlu0.b32.cont [13/16] 0.0, 128
        %610 = vxpose.xlu0.b32.cont [14/16] 0.0, 128
        %611 = vxpose.xlu0.b32.cont [15/16] 0.0, 128
        %612 = vxpose.xlu0.b32.end [16/16] 0.0, 128
        %v613 = vpop.trf.xlu0
        %v614 = vpop.trf.xlu0
        %v615 = vpop.trf.xlu0
        %v616 = vpop.trf.xlu0
        %v617 = vpop.trf.xlu0
        %v618 = vpop.trf.xlu0
        %v619 = vpop.trf.xlu0
        %v620 = vpop.trf.xlu0
        %v621 = vpop.trf.xlu0
        %v622 = vpop.trf.xlu0
        %v623 = vpop.trf.xlu0
        %v624 = vpop.trf.xlu0
        %v625 = vpop.trf.xlu0
        %v626 = vpop.trf.xlu0
        %v627 = vpop.trf.xlu0
        %v628 = vpop.trf.xlu0
        %vm629 = vcmask 523264
        %630 = vst.msk [vmem:[%s207] sm:$0xff] %vm629, %v613
        %s631 = sand.u32 %s112, 1
        %s632 = scalar_lea.sflag [#allocation4], %s631
        %s633 = sand.u32 %s112, 1
        %s634 = smul.addr %s633, 8
        %s635 = scalar_lea.vmem [#allocation5], %s634
        // Predicated region
        $region37: #{tpu_custom_call.1} parent=31 // pred_check
          %p636 = pneg %p122
        $region38: #{tpu_custom_call.1} parent=31 // pred_check_branch
          %638 = sbr.rel (%p636) target = $region40
        $region39: #{tpu_custom_call.1} parent=31 // pred_region
          %s640 = ssub.s32 128, 128
          %641 = vsyncadd %s632, %s640
          %s642 = sadd.s32 %s25, %s24
          %s643 = smul.addr %s642, 128
          %s644 = scalar_lea.hbm %s3, %s643
          %s646 = sshll.u32 %s635, 4
          %s647 = int_to_ptr.vmem [resolvable:$true] %s646
          %649 = dma.vmem_to_hbm [thread:$0]  %s647, 128, %s644, %s632
        $region40: #{tpu_custom_call.1} parent=31 // pred_fallthru
          _
      $region32: #{tpu_custom_call.1} parent=5 // pred_fallthru
        _
      %p650 = scmp.le.s32.totalorder 2, %s15
      // Predicated region
      $region41: #{tpu_custom_call.1} parent=5 // pred_check
        %p651 = pneg %p650
      $region42: #{tpu_custom_call.1} parent=5 // pred_check_branch
        %653 = sbr.rel (%p651) target = $region44
      $region43: #{tpu_custom_call.1} parent=5 // pred_region
        %s654 = ssub.s32 %s15, 2
        // Predicated region
        $region45: #{tpu_custom_call.1} parent=43 // pred_check
          %p655 = pneg %p128
        $region46: #{tpu_custom_call.1} parent=43 // pred_check_branch
          %657 = sbr.rel (%p655) target = $region48
        $region47: #{tpu_custom_call.1} parent=43 // pred_region
          %s658 = sand.u32 %s113, 1
          %s659 = scalar_lea.sflag [#allocation4], %s658
          %s660 = sand.u32 %s113, 1
          %s661 = smul.addr %s660, 8
          %s662 = scalar_lea.vmem [#allocation5], %s661
          %663 = dma.done %s659, 128
        $region48: #{tpu_custom_call.1} parent=43 // pred_fallthru
          _
      $region44: #{tpu_custom_call.1} parent=5 // pred_fallthru
        _
    $region6: #{tpu_custom_call.1} parent=1 // loop_footer
      %s19 = sadd.s32 1, %s15
    $region7: #{tpu_custom_call.1} parent=1 // loop_footer_branch
      %14 = sbr.rel target = $region3
    $region8: #{tpu_custom_call.1} parent=1 // loop_exit
      _
    %664 = vsyncpa [#allocation3], 1
    %s665 = scalar_lea.sflag [#allocation3], 1
    %666 = vsyncpa %s665, 1
    %667 = vsyncpa [#allocation4], 1
    %s668 = scalar_lea.sflag [#allocation4], 1
    %669 = vsyncpa %s668, 1

</llo_original>
